<compile_context>
chip_gen: v5e
topology: v5e:2x2
jax: 0.10.0
libtpu: 0.0.40
codegen_flags: <defaults>
</compile_context>

<pallas_src>
import functools

import jax
import jax.numpy as jnp
from jax.experimental import pallas as pl
from jax.experimental.pallas import tpu as pltpu


def _round_up(n, m):
    return ((n + m - 1) // m) * m


def _discriminator_kernel(x_ref, w1_ref, w2_ref, pack_ref, o_ref, *, precision):
    mxu_dtype = w1_ref.dtype

    # In-kernel cast of the activation stream (VPU) -> no extra XLA pass over x in HBM.
    x = x_ref[...].astype(mxu_dtype)

    b1 = pack_ref[0:1, :]        # (1, hidden) f32
    b2 = pack_ref[1:2, :]        # (1, hidden) f32
    w3 = pack_ref[2:3, :]        # (1, hidden) f32
    b3 = pack_ref[3:4, 0:1]      # (1, 1)      f32

    # Layers 1 & 2: MXU matmuls, f32 accumulation.
    h1 = jnp.dot(x, w1_ref[...], preferred_element_type=jnp.float32, precision=precision)
    h1 = jnp.maximum(h1 + b1, 0.0)
    h2 = jnp.dot(h1.astype(mxu_dtype), w2_ref[...],
                 preferred_element_type=jnp.float32, precision=precision)
    h2 = jnp.maximum(h2 + b2, 0.0)

    # Layer 3 (hidden -> 1): VPU broadcast-multiply + cross-lane reduce (XLU) -- skips the MXU.
    logits = jnp.sum(h2 * w3, axis=-1)[None, :] + b3            # (1, tb)

    # Sigmoid epilogue on the EUP; exact reciprocal for parity with the reference.
    probs = pl.reciprocal(1.0 + jnp.exp(-logits), approx=False)

    # Lane-dense store: the whole batch tile lives along lanes of a single (1, 1, tb) slab.
    o_ref[...] = probs[None].astype(o_ref.dtype)


def prepare_params(params, mxu_dtype=jnp.float32):
    """Cast / pack weights ONCE, outside the per-call path.

    Returns {'w1': (in, hid) mxu_dtype, 'w2': (hid, hid) mxu_dtype,
             'pack': (4, hid) f32 rows = [b1; b2; w3; [b3, 0, ...]]}.
    """
    w1 = jnp.asarray(params["w1"], mxu_dtype)
    w2 = jnp.asarray(params["w2"], mxu_dtype)
    hidden = w1.shape[1]
    b1 = jnp.asarray(params["b1"], jnp.float32).reshape(1, hidden)
    b2 = jnp.asarray(params["b2"], jnp.float32).reshape(1, hidden)
    w3 = jnp.asarray(params["w3"], jnp.float32).reshape(1, hidden)
    b3 = jnp.asarray(params["b3"], jnp.float32).reshape(1, 1)
    b3_row = jnp.concatenate([b3, jnp.zeros((1, hidden - 1), jnp.float32)], axis=1)
    pack = jnp.concatenate([b1, b2, w3, b3_row], axis=0)         # (4, hidden)
    return {"w1": w1, "w2": w2, "pack": pack}


def discriminator_forward(x, prepared, *, block_b=512, x_buffers=None,
                          precision=jax.lax.Precision.HIGHEST):
    """x: (B, input_dim). prepared: output of prepare_params. Returns (B, 1) f32 probabilities."""
    w1, w2, pack = prepared["w1"], prepared["w2"], prepared["pack"]
    B, input_dim = x.shape
    hidden = w1.shape[1]
    mxu_dtype = w1.dtype

    # Sublane multiple: bf16 packs two rows per sublane.
    sub = 16 if mxu_dtype == jnp.bfloat16 else 8
    # Batch tile: sublane-rounded and capped so the grid has >= 2 steps when B allows (v7x megacore).
    tb = min(_round_up(block_b, sub), max(sub, _round_up(pl.cdiv(B, 2), sub)))
    num_blocks = pl.cdiv(B, tb)

    # Explicit VMEM budget: resident weights/pack + double-buffered x/out + f32 h1/h2 intermediates.
    w_bytes = (input_dim * hidden + hidden * hidden) * w1.dtype.itemsize
    pack_bytes = 4 * hidden * 4
    stream_bytes = 2 * tb * input_dim * x.dtype.itemsize + 2 * tb * 4
    act_bytes = 2 * tb * hidden * 4
    vmem_limit = int(min(100 * 2**20, max(32 * 2**20, 2 * (w_bytes + pack_bytes + stream_bytes + act_bytes))))

    x_map = lambda i: (i, 0)        # activations walk the batch
    res_map = lambda i: (0, 0)      # weights / biases stay resident in VMEM

    def build(use_pipeline_hints):
        if use_pipeline_hints:
            res = lambda shape: pl.BlockSpec(shape, res_map, pipeline_mode=pl.Buffered(1))
            if x_buffers is not None:   # e.g. 3 on v5e to hide the exposed x DMA
                x_spec = pl.BlockSpec((tb, input_dim), x_map, pipeline_mode=pl.Buffered(int(x_buffers)))
            else:
                x_spec = pl.BlockSpec((tb, input_dim), x_map)
        else:
            res = lambda shape: pl.BlockSpec(shape, res_map)
            x_spec = pl.BlockSpec((tb, input_dim), x_map)
        return pl.pallas_call(
            functools.partial(_discriminator_kernel, precision=precision),
            out_shape=jax.ShapeDtypeStruct((num_blocks, 1, tb), jnp.float32),
            grid=(num_blocks,),
            in_specs=[x_spec,
                      res((input_dim, hidden)),
                      res((hidden, hidden)),
                      res((4, hidden))],
            out_specs=pl.BlockSpec((1, 1, tb), lambda i: (i, 0, 0)),
            compiler_params=pltpu.CompilerParams(
                dimension_semantics=("parallel",),
                vmem_limit_bytes=vmem_limit),
        )

    try:
        out = build(True)(x, w1, w2, pack)
    except Exception:  # pragma: no cover - fall back if this Pallas build rejects Buffered(1)
        out = build(False)(x, w1, w2, pack)

    # Rows >= B of the ragged last block are garbage by construction; slice before anyone reads them.
    return out.reshape(num_blocks * tb, 1)[:B]


def init_params(key, input_dim, hidden_dim):
    """torch.nn.Linear-style init: U[-1/sqrt(fan_in), 1/sqrt(fan_in)] for W and b."""
    def linear(key, fan_in, fan_out):
        kw, kb = jax.random.split(key)
        bound = 1.0 / jnp.sqrt(float(fan_in))
        w = jax.random.uniform(kw, (fan_in, fan_out), jnp.float32, -bound, bound)
        b = jax.random.uniform(kb, (1, fan_out), jnp.float32, -bound, bound)
        return w, b

    k1, k2, k3 = jax.random.split(key, 3)
    w1, b1 = linear(k1, input_dim, hidden_dim)
    w2, b2 = linear(k2, hidden_dim, hidden_dim)
    w3, b3 = linear(k3, hidden_dim, 1)
    return {"w1": w1, "b1": b1, "w2": w2, "b2": b2, "w3": w3, "b3": b3}


def _reference_forward(x, p, precision=jax.lax.Precision.HIGHEST):
    h1 = jnp.maximum(jnp.dot(x, p["w1"], precision=precision) + p["b1"], 0.0)
    h2 = jnp.maximum(jnp.dot(h1, p["w2"], precision=precision) + p["b2"], 0.0)
    return jax.nn.sigmoid(jnp.dot(h2, p["w3"], precision=precision) + p["b3"])


if __name__ == "__main__":
    key = jax.random.PRNGKey(0)
    k_x, k_p, k_x2 = jax.random.split(key, 3)

    batch, input_dim, hidden_dim = 8, 64, 32
    x = jax.random.normal(k_x, (batch, input_dim), dtype=jnp.float32)
    params = init_params(k_p, input_dim, hidden_dim)

    # Weights are cast/packed once, outside the per-call path, then reused across calls.
    prepped_f32 = prepare_params(params, jnp.float32)

    # f32 path (precision=HIGHEST in both kernel and reference -> matches to roundoff).
    out = jax.block_until_ready(discriminator_forward(x, prepped_f32))
    ref = _reference_forward(x, params)
    assert out.shape == (batch, 1)
    assert jnp.allclose(out, ref, atol=1e-3, rtol=1e-3), "f32 path mismatch vs JAX reference"

    # Ragged batch + multi-step grid (exercises batch tiling without jnp.pad, resident weights).
    batch2 = 50
    x2 = jax.random.normal(k_x2, (batch2, input_dim), dtype=jnp.float32)
    out2 = jax.block_until_ready(discriminator_forward(x2, prepped_f32, block_b=16))
    ref2 = _reference_forward(x2, params)
    assert out2.shape == (batch2, 1)
    assert jnp.allclose(out2, ref2, atol=1e-3, rtol=1e-3), "tiled path mismatch vs JAX reference"

    # bf16 MXU-input fast path (v6e/v7x); x is cast inside the kernel, accumulation stays f32.
    # Note: this quantizes the inter-layer activation to bf16, hence the looser tolerance.
    prepped_bf16 = prepare_params(params, jnp.bfloat16)
    out_bf16 = jax.block_until_ready(discriminator_forward(x2, prepped_bf16, block_b=16))
    assert out_bf16.shape == (batch2, 1)
    assert jnp.allclose(out_bf16, ref2, atol=2e-2, rtol=2e-2), "bf16 path mismatch vs JAX reference"

    print("KERNEL_OK")
</pallas_src>

<mosaic_0001>
module attributes {stable_mosaic.version = 11 : i64} {
  func.func @_discriminator_kernel(%arg0: i32, %arg1: memref<8x64xf32, #tpu.memory_space<vmem>>, %arg2: memref<64x32xf32, #tpu.memory_space<vmem>>, %arg3: memref<32x32xf32, #tpu.memory_space<vmem>>, %arg4: memref<4x32xf32, #tpu.memory_space<vmem>>, %arg5: memref<1x1x8xf32, #tpu.memory_space<vmem>>) attributes {dimension_semantics = [#tpu.dimension_semantics<parallel>], iteration_bounds = array<i64: 1>, scalar_prefetch = 0 : i64, scratch_operands = 0 : i64, tpu.core_type = #tpu.core_type<tc>, window_params = [{transform_indices = @transform_0, window_bounds = array<i64: 8, 64>}, {pipeline_mode = #tpu.pipeline_mode<synchronous>, transform_indices = @transform_1, window_bounds = array<i64: 64, 32>}, {pipeline_mode = #tpu.pipeline_mode<synchronous>, transform_indices = @transform_2, window_bounds = array<i64: 32, 32>}, {pipeline_mode = #tpu.pipeline_mode<synchronous>, transform_indices = @transform_3, window_bounds = array<i64: 4, 32>}, {transform_indices = @transform_4, window_bounds = array<i64: 1, 1, 8>}]} {
    %c0 = arith.constant 0 : index
    %c0_0 = arith.constant 0 : index
    %0 = vector.load %arg1[%c0, %c0_0] : memref<8x64xf32, #tpu.memory_space<vmem>>, vector<8x64xf32>
    %c0_1 = arith.constant 0 : index
    %c0_2 = arith.constant 0 : index
    %1 = vector.load %arg4[%c0_1, %c0_2] : memref<4x32xf32, #tpu.memory_space<vmem>>, vector<1x32xf32>
    %c1 = arith.constant 1 : index
    %c0_3 = arith.constant 0 : index
    %2 = vector.load %arg4[%c1, %c0_3] : memref<4x32xf32, #tpu.memory_space<vmem>>, vector<1x32xf32>
    %c2 = arith.constant 2 : index
    %c0_4 = arith.constant 0 : index
    %3 = vector.load %arg4[%c2, %c0_4] : memref<4x32xf32, #tpu.memory_space<vmem>>, vector<1x32xf32>
    %c3 = arith.constant 3 : index
    %c0_5 = arith.constant 0 : index
    %4 = vector.load %arg4[%c3, %c0_5] : memref<4x32xf32, #tpu.memory_space<vmem>>, vector<1x1xf32>
    %c0_6 = arith.constant 0 : index
    %c0_7 = arith.constant 0 : index
    %5 = vector.load %arg2[%c0_6, %c0_7] : memref<64x32xf32, #tpu.memory_space<vmem>>, vector<64x32xf32>
    %cst = arith.constant dense<0.000000e+00> : vector<8x32xf32>
    %6 = tpu.matmul %0, %5, %cst {dimension_numbers = #tpu.dot_dimension_numbers<[1], [0], [0], [1], [0, 0, 1, 1], [], []>, precision = #tpu.contract_precision<fp32>} : vector<8x64xf32>, vector<64x32xf32>, vector<8x32xf32> -> vector<8x32xf32>
    %7 = vector.broadcast %1 : vector<1x32xf32> to vector<8x32xf32>
    %8 = arith.addf %6, %7 : vector<8x32xf32>
    %cst_8 = arith.constant 0.000000e+00 : f32
    %9 = vector.broadcast %cst_8 : f32 to vector<8x32xf32>
    %10 = arith.maximumf %8, %9 : vector<8x32xf32>
    %c0_9 = arith.constant 0 : index
    %c0_10 = arith.constant 0 : index
    %11 = vector.load %arg3[%c0_9, %c0_10] : memref<32x32xf32, #tpu.memory_space<vmem>>, vector<32x32xf32>
    %cst_11 = arith.constant dense<0.000000e+00> : vector<8x32xf32>
    %12 = tpu.matmul %10, %11, %cst_11 {dimension_numbers = #tpu.dot_dimension_numbers<[1], [0], [0], [1], [0, 0, 1, 1], [], []>, precision = #tpu.contract_precision<fp32>} : vector<8x32xf32>, vector<32x32xf32>, vector<8x32xf32> -> vector<8x32xf32>
    %13 = vector.broadcast %2 : vector<1x32xf32> to vector<8x32xf32>
    %14 = arith.addf %12, %13 : vector<8x32xf32>
    %cst_12 = arith.constant 0.000000e+00 : f32
    %15 = vector.broadcast %cst_12 : f32 to vector<8x32xf32>
    %16 = arith.maximumf %14, %15 : vector<8x32xf32>
    %17 = vector.broadcast %3 : vector<1x32xf32> to vector<8x32xf32>
    %18 = arith.mulf %16, %17 : vector<8x32xf32>
    %cst_13 = arith.constant dense<0.000000e+00> : vector<8xf32>
    %19 = vector.multi_reduction <add>, %18, %cst_13 [1] : vector<8x32xf32> to vector<8xf32>
    %20 = vector.shape_cast %19 : vector<8xf32> to vector<1x8xf32>
    %21 = vector.broadcast %4 : vector<1x1xf32> to vector<1x8xf32>
    %22 = arith.addf %20, %21 : vector<1x8xf32>
    %cst_14 = arith.constant 0.000000e+00 : f32
    %23 = vector.broadcast %cst_14 : f32 to vector<1x8xf32>
    %24 = arith.subf %23, %22 : vector<1x8xf32>
    %25 = math.exp %24 : vector<1x8xf32>
    %cst_15 = arith.constant 1.000000e+00 : f32
    %26 = vector.broadcast %cst_15 : f32 to vector<1x8xf32>
    %27 = arith.addf %26, %25 : vector<1x8xf32>
    %28 = tpu.reciprocal %27 : vector<1x8xf32> -> vector<1x8xf32>
    %29 = vector.shape_cast %28 : vector<1x8xf32> to vector<1x1x8xf32>
    %c0_16 = arith.constant 0 : index
    %c0_17 = arith.constant 0 : index
    %c0_18 = arith.constant 0 : index
    %30 = vector.load %arg5[%c0_16, %c0_17, %c0_18] : memref<1x1x8xf32, #tpu.memory_space<vmem>>, vector<1x1x8xf32>
    tpu.vector_store %arg5[%c0_16, %c0_17, %c0_18], %29 {strides = array<i32>} : memref<1x1x8xf32, #tpu.memory_space<vmem>>, vector<1x1x8xf32>,
    return
  }
  func.func @transform_0(%arg0: i32) -> (i32, i32) {
    %c0_i32 = arith.constant 0 : i32
    %c0_i32_0 = arith.constant 0 : i32
    return %arg0, %c0_i32 : i32, i32
  }
  func.func @transform_1(%arg0: i32) -> (i32, i32) {
    %c0_i32 = arith.constant 0 : i32
    %c0_i32_0 = arith.constant 0 : i32
    %c0_i32_1 = arith.constant 0 : i32
    return %c0_i32, %c0_i32_0 : i32, i32
  }
  func.func @transform_2(%arg0: i32) -> (i32, i32) {
    %c0_i32 = arith.constant 0 : i32
    %c0_i32_0 = arith.constant 0 : i32
    %c0_i32_1 = arith.constant 0 : i32
    return %c0_i32, %c0_i32_0 : i32, i32
  }
  func.func @transform_3(%arg0: i32) -> (i32, i32) {
    %c0_i32 = arith.constant 0 : i32
    %c0_i32_0 = arith.constant 0 : i32
    %c0_i32_1 = arith.constant 0 : i32
    return %c0_i32, %c0_i32_0 : i32, i32
  }
  func.func @transform_4(%arg0: i32) -> (i32, i32, i32) {
    %c0_i32 = arith.constant 0 : i32
    %c0_i32_0 = arith.constant 0 : i32
    %c0_i32_1 = arith.constant 0 : i32
    return %arg0, %c0_i32, %c0_i32_0 : i32, i32, i32
  }
}

module attributes {stable_mosaic.version = 11 : i64} {
  func.func @_discriminator_kernel(%arg0: i32, %arg1: memref<8x64xf32, #tpu.memory_space<vmem>>, %arg2: memref<64x32xf32, #tpu.memory_space<vmem>>, %arg3: memref<32x32xf32, #tpu.memory_space<vmem>>, %arg4: memref<4x32xf32, #tpu.memory_space<vmem>>, %arg5: memref<1x1x8xf32, #tpu.memory_space<vmem>>) attributes {dimension_semantics = [#tpu.dimension_semantics<parallel>], iteration_bounds = array<i64: 1>, scalar_prefetch = 0 : i64, scratch_operands = 0 : i64, tpu.core_type = #tpu.core_type<tc>, window_params = [{transform_indices = @transform_0, window_bounds = array<i64: 8, 64>}, {pipeline_mode = #tpu.pipeline_mode<synchronous>, transform_indices = @transform_1, window_bounds = array<i64: 64, 32>}, {pipeline_mode = #tpu.pipeline_mode<synchronous>, transform_indices = @transform_2, window_bounds = array<i64: 32, 32>}, {pipeline_mode = #tpu.pipeline_mode<synchronous>, transform_indices = @transform_3, window_bounds = array<i64: 4, 32>}, {transform_indices = @transform_4, window_bounds = array<i64: 1, 1, 8>}]} {
    %c0 = arith.constant 0 : index
    %c0_0 = arith.constant 0 : index
    %0 = vector.load %arg1[%c0, %c0_0] : memref<8x64xf32, #tpu.memory_space<vmem>>, vector<8x64xf32>
    %c0_1 = arith.constant 0 : index
    %c0_2 = arith.constant 0 : index
    %1 = vector.load %arg4[%c0_1, %c0_2] : memref<4x32xf32, #tpu.memory_space<vmem>>, vector<1x32xf32>
    %c1 = arith.constant 1 : index
    %c0_3 = arith.constant 0 : index
    %2 = vector.load %arg4[%c1, %c0_3] : memref<4x32xf32, #tpu.memory_space<vmem>>, vector<1x32xf32>
    %c2 = arith.constant 2 : index
    %c0_4 = arith.constant 0 : index
    %3 = vector.load %arg4[%c2, %c0_4] : memref<4x32xf32, #tpu.memory_space<vmem>>, vector<1x32xf32>
    %c3 = arith.constant 3 : index
    %c0_5 = arith.constant 0 : index
    %4 = vector.load %arg4[%c3, %c0_5] : memref<4x32xf32, #tpu.memory_space<vmem>>, vector<1x1xf32>
    %c0_6 = arith.constant 0 : index
    %c0_7 = arith.constant 0 : index
    %5 = vector.load %arg2[%c0_6, %c0_7] : memref<64x32xf32, #tpu.memory_space<vmem>>, vector<64x32xf32>
    %cst = arith.constant dense<0.000000e+00> : vector<8x32xf32>
    %6 = tpu.matmul %0, %5, %cst {dimension_numbers = #tpu.dot_dimension_numbers<[1], [0], [0], [1], [0, 0, 1, 1], [], []>, precision = #tpu.contract_precision<fp32>} : vector<8x64xf32>, vector<64x32xf32>, vector<8x32xf32> -> vector<8x32xf32>
    %7 = vector.broadcast %1 : vector<1x32xf32> to vector<8x32xf32>
    %8 = arith.addf %6, %7 : vector<8x32xf32>
    %cst_8 = arith.constant 0.000000e+00 : f32
    %9 = vector.broadcast %cst_8 : f32 to vector<8x32xf32>
    %10 = arith.maximumf %8, %9 : vector<8x32xf32>
    %c0_9 = arith.constant 0 : index
    %c0_10 = arith.constant 0 : index
    %11 = vector.load %arg3[%c0_9, %c0_10] : memref<32x32xf32, #tpu.memory_space<vmem>>, vector<32x32xf32>
    %cst_11 = arith.constant dense<0.000000e+00> : vector<8x32xf32>
    %12 = tpu.matmul %10, %11, %cst_11 {dimension_numbers = #tpu.dot_dimension_numbers<[1], [0], [0], [1], [0, 0, 1, 1], [], []>, precision = #tpu.contract_precision<fp32>} : vector<8x32xf32>, vector<32x32xf32>, vector<8x32xf32> -> vector<8x32xf32>
    %13 = vector.broadcast %2 : vector<1x32xf32> to vector<8x32xf32>
    %14 = arith.addf %12, %13 : vector<8x32xf32>
    %cst_12 = arith.constant 0.000000e+00 : f32
    %15 = vector.broadcast %cst_12 : f32 to vector<8x32xf32>
    %16 = arith.maximumf %14, %15 : vector<8x32xf32>
    %17 = vector.broadcast %3 : vector<1x32xf32> to vector<8x32xf32>
    %18 = arith.mulf %16, %17 : vector<8x32xf32>
    %cst_13 = arith.constant dense<0.000000e+00> : vector<8xf32>
    %19 = vector.multi_reduction <add>, %18, %cst_13 [1] : vector<8x32xf32> to vector<8xf32>
    %20 = vector.shape_cast %19 : vector<8xf32> to vector<1x8xf32>
    %21 = vector.broadcast %4 : vector<1x1xf32> to vector<1x8xf32>
    %22 = arith.addf %20, %21 : vector<1x8xf32>
    %cst_14 = arith.constant 0.000000e+00 : f32
    %23 = vector.broadcast %cst_14 : f32 to vector<1x8xf32>
    %24 = arith.subf %23, %22 : vector<1x8xf32>
    %25 = math.exp %24 : vector<1x8xf32>
    %cst_15 = arith.constant 1.000000e+00 : f32
    %26 = vector.broadcast %cst_15 : f32 to vector<1x8xf32>
    %27 = arith.addf %26, %25 : vector<1x8xf32>
    %28 = tpu.reciprocal %27 : vector<1x8xf32> -> vector<1x8xf32>
    %29 = vector.shape_cast %28 : vector<1x8xf32> to vector<1x1x8xf32>
    %c0_16 = arith.constant 0 : index
    %c0_17 = arith.constant 0 : index
    %c0_18 = arith.constant 0 : index
    %30 = vector.load %arg5[%c0_16, %c0_17, %c0_18] : memref<1x1x8xf32, #tpu.memory_space<vmem>>, vector<1x1x8xf32>
    tpu.vector_store %arg5[%c0_16, %c0_17, %c0_18], %29 {strides = array<i32>} : memref<1x1x8xf32, #tpu.memory_space<vmem>>, vector<1x1x8xf32>,
    return
  }
  func.func @transform_0(%arg0: i32) -> (i32, i32) {
    %c0_i32 = arith.constant 0 : i32
    %c0_i32_0 = arith.constant 0 : i32
    return %arg0, %c0_i32 : i32, i32
  }
  func.func @transform_1(%arg0: i32) -> (i32, i32) {
    %c0_i32 = arith.constant 0 : i32
    %c0_i32_0 = arith.constant 0 : i32
    %c0_i32_1 = arith.constant 0 : i32
    return %c0_i32, %c0_i32_0 : i32, i32
  }
  func.func @transform_2(%arg0: i32) -> (i32, i32) {
    %c0_i32 = arith.constant 0 : i32
    %c0_i32_0 = arith.constant 0 : i32
    %c0_i32_1 = arith.constant 0 : i32
    return %c0_i32, %c0_i32_0 : i32, i32
  }
  func.func @transform_3(%arg0: i32) -> (i32, i32) {
    %c0_i32 = arith.constant 0 : i32
    %c0_i32_0 = arith.constant 0 : i32
    %c0_i32_1 = arith.constant 0 : i32
    return %c0_i32, %c0_i32_0 : i32, i32
  }
  func.func @transform_4(%arg0: i32) -> (i32, i32, i32) {
    %c0_i32 = arith.constant 0 : i32
    %c0_i32_0 = arith.constant 0 : i32
    %c0_i32_1 = arith.constant 0 : i32
    return %arg0, %c0_i32, %c0_i32_0 : i32, i32, i32
  }
}

</mosaic_0001>

<llo_original>
// kernel: tpu_custom_call.1
$region0: #{tpu_custom_call.1}
  #allocation0 [shape = 'u32[]', space=smem, size = 0x4, offset = 0x4, fixed_abs, tag = 'smem constant byte address 0x4 - core index']
  #allocation1 [shape = 'u32[72,128]{1,0:T(1,128)}', space=vmem, size = 0x9000, scoped, tag = 'internal scratch']
  %s0 = inlined_call_operand.vmem [shape: f32[8,64], index: 0, kind: input, shape index: {}]
  %s1 = inlined_call_operand.vmem [shape: f32[64,32], index: 1, kind: input, shape index: {}]
  %s2 = inlined_call_operand.vmem [shape: f32[32,32], index: 2, kind: input, shape index: {}]
  %s3 = inlined_call_operand.vmem [shape: f32[4,32], index: 3, kind: input, shape index: {}]
  %s4 = inlined_call_operand.hbm [shape: f32[1,1,8], index: 4, kind: output, shape index: {}]
  %s5 = sld [smem:[#allocation0]]
  $region26: #{tpu_custom_call.1} parent=0
    _
  %s7 = ssub.s32 1, %s5
  %s8 = scalar_select 0, %s7, %s5
  $region1: #{tpu_custom_call.1} parent=0
    #allocation2 [shape = 'u8[512]{0}', space=vmem, size = 0x400, scoped, tag = 'output window, operand 0, single buffered']
    #allocation3 [shape = 's32[1]{0}', space=sflag, size = 0x4, scoped, tag = 'scoped memory for tpu_custom_call.1']
    %9 = vsyncpa [#allocation3], 0
    // Predicated region
    $region2: #{tpu_custom_call.1} parent=1 // pred_check
      _
    $region3: #{tpu_custom_call.1} parent=1 // pred_check_branch
      %11 = sbr.rel (0) target = $region5
    $region4: #{tpu_custom_call.1} parent=1 // pred_region
      _
    $region5: #{tpu_custom_call.1} parent=1 // pred_fallthru
      _
    // Predicated region
    $region6: #{tpu_custom_call.1} parent=1 // pred_check
      _
    $region7: #{tpu_custom_call.1} parent=1 // pred_check_branch
      %13 = sbr.rel (0) target = $region9
    $region8: #{tpu_custom_call.1} parent=1 // pred_region
      _
    $region9: #{tpu_custom_call.1} parent=1 // pred_fallthru
      _
    // Predicated region
    $region10: #{tpu_custom_call.1} parent=1 // pred_check
      _
    $region11: #{tpu_custom_call.1} parent=1 // pred_check_branch
      %15 = sbr.rel (0) target = $region13
    $region12: #{tpu_custom_call.1} parent=1 // pred_region
      _
    $region13: #{tpu_custom_call.1} parent=1 // pred_fallthru
      _
    // Predicated region
    $region14: #{tpu_custom_call.1} parent=1 // pred_check
      _
    $region15: #{tpu_custom_call.1} parent=1 // pred_check_branch
      %17 = sbr.rel (0) target = $region17
    $region16: #{tpu_custom_call.1} parent=1 // pred_region
      _
    $region17: #{tpu_custom_call.1} parent=1 // pred_fallthru
      _
    %v18 = vld [vmem:[%s0] sm:$0xff]
    %v19 = vld [vmem:[%s3] sm:$0x1]
    %v20 = vld [vmem:[%s3 + $0x1] sm:$0x1]
    %v21 = vld [vmem:[%s3 + $0x2] sm:$0x1]
    %v22 = vld [vmem:[%s3 + $0x3] sm:$0x1]
    %v23 = vld [vmem:[%s1] sm:$0xff]
    %v24 = vld [vmem:[%s1 + $0x8] sm:$0xff]
    %v25 = vld [vmem:[%s1 + $0x10] sm:$0xff]
    %v26 = vld [vmem:[%s1 + $0x18] sm:$0xff]
    %v27 = vld [vmem:[%s1 + $0x20] sm:$0xff]
    %v28 = vld [vmem:[%s1 + $0x28] sm:$0xff]
    %v29 = vld [vmem:[%s1 + $0x30] sm:$0xff]
    %v30 = vld [vmem:[%s1 + $0x38] sm:$0xff]
    %v31 = vperm.slane %v19, 0
    %vm32 = vcmask 523264
    %v34 = vsel %vm32, %v18, 0
    %36 = vmatpush.msra.mxu0 0.0
    %37 = vmatpush.msra.mxu0 0.0
    %38 = vmatpush.msra.mxu0 0.0
    %39 = vmatpush.msra.mxu0 0.0
    %40 = vmatpush.msra.mxu0 0.0
    %41 = vmatpush.msra.mxu0 0.0
    %42 = vmatpush.msra.mxu0 0.0
    %43 = vmatpush.msra.mxu0 0.0
    %v44 = vand.u32 %v30, 4294901760
    %45 = vmatpush.msra.mxu0 %v44
    %v46 = vand.u32 %v29, 4294901760
    %47 = vmatpush.msra.mxu0 %v46
    %v48 = vand.u32 %v28, 4294901760
    %49 = vmatpush.msra.mxu0 %v48
    %v50 = vand.u32 %v27, 4294901760
    %51 = vmatpush.msra.mxu0 %v50
    %v52 = vand.u32 %v26, 4294901760
    %53 = vmatpush.msra.mxu0 %v52
    %v54 = vand.u32 %v25, 4294901760
    %55 = vmatpush.msra.mxu0 %v54
    %v56 = vand.u32 %v24, 4294901760
    %57 = vmatpush.msra.mxu0 %v56
    %v58 = vand.u32 %v23, 4294901760
    %59 = vmatpush.msra.mxu0 %v58
    %v60 = vand.u32 %v34, 4294901760
    %v61 = vsub.f32 %v34, %v60
    %v62 = vand.u32 %v61, 4294901760
    %v63 = vsub.f32 %v61, %v62
    %v64 = vand.u32 %v63, 4294901760
    %65 = vmatmul.f32.gmra.mxu0 %v64
    %v66 = vpop.f32.mrf.mxu0
    %v67 = vadd.f32 %v31, %v66
    %68 = vdwg.mxu0
    %69 = vmatpush.msra.mxu0 0.0
    %70 = vmatpush.msra.mxu0 0.0
    %71 = vmatpush.msra.mxu0 0.0
    %72 = vmatpush.msra.mxu0 0.0
    %73 = vmatpush.msra.mxu0 0.0
    %74 = vmatpush.msra.mxu0 0.0
    %75 = vmatpush.msra.mxu0 0.0
    %76 = vmatpush.msra.mxu0 0.0
    %v77 = vand.u32 %v30, 4294901760
    %v78 = vsub.f32 %v30, %v77
    %v79 = vand.u32 %v78, 4294901760
    %v80 = vsub.f32 %v78, %v79
    %v81 = vand.u32 %v80, 4294901760
    %82 = vmatpush.msra.mxu0 %v81
    %v83 = vand.u32 %v29, 4294901760
    %v84 = vsub.f32 %v29, %v83
    %v85 = vand.u32 %v84, 4294901760
    %v86 = vsub.f32 %v84, %v85
    %v87 = vand.u32 %v86, 4294901760
    %88 = vmatpush.msra.mxu0 %v87
    %v89 = vand.u32 %v28, 4294901760
    %v90 = vsub.f32 %v28, %v89
    %v91 = vand.u32 %v90, 4294901760
    %v92 = vsub.f32 %v90, %v91
    %v93 = vand.u32 %v92, 4294901760
    %94 = vmatpush.msra.mxu0 %v93
    %v95 = vand.u32 %v27, 4294901760
    %v96 = vsub.f32 %v27, %v95
    %v97 = vand.u32 %v96, 4294901760
    %v98 = vsub.f32 %v96, %v97
    %v99 = vand.u32 %v98, 4294901760
    %100 = vmatpush.msra.mxu0 %v99
    %v101 = vand.u32 %v26, 4294901760
    %v102 = vsub.f32 %v26, %v101
    %v103 = vand.u32 %v102, 4294901760
    %v104 = vsub.f32 %v102, %v103
    %v105 = vand.u32 %v104, 4294901760
    %106 = vmatpush.msra.mxu0 %v105
    %v107 = vand.u32 %v25, 4294901760
    %v108 = vsub.f32 %v25, %v107
    %v109 = vand.u32 %v108, 4294901760
    %v110 = vsub.f32 %v108, %v109
    %v111 = vand.u32 %v110, 4294901760
    %112 = vmatpush.msra.mxu0 %v111
    %v113 = vand.u32 %v24, 4294901760
    %v114 = vsub.f32 %v24, %v113
    %v115 = vand.u32 %v114, 4294901760
    %v116 = vsub.f32 %v114, %v115
    %v117 = vand.u32 %v116, 4294901760
    %118 = vmatpush.msra.mxu0 %v117
    %v119 = vand.u32 %v23, 4294901760
    %v120 = vsub.f32 %v23, %v119
    %v121 = vand.u32 %v120, 4294901760
    %v122 = vsub.f32 %v120, %v121
    %v123 = vand.u32 %v122, 4294901760
    %124 = vmatpush.msra.mxu0 %v123
    %v125 = vand.u32 %v34, 4294901760
    %126 = vmatmul.f32.gmra.mxu0 %v125
    %v127 = vpop.f32.mrf.mxu0
    %v128 = vadd.f32 %v67, %v127
    %129 = vdwg.mxu0
    %130 = vmatpush.msra.mxu0 0.0
    %131 = vmatpush.msra.mxu0 0.0
    %132 = vmatpush.msra.mxu0 0.0
    %133 = vmatpush.msra.mxu0 0.0
    %134 = vmatpush.msra.mxu0 0.0
    %135 = vmatpush.msra.mxu0 0.0
    %136 = vmatpush.msra.mxu0 0.0
    %137 = vmatpush.msra.mxu0 0.0
    %v138 = vand.u32 %v30, 4294901760
    %v139 = vsub.f32 %v30, %v138
    %140 = vmatpush.msra.mxu0 %v139
    %v141 = vand.u32 %v29, 4294901760
    %v142 = vsub.f32 %v29, %v141
    %143 = vmatpush.msra.mxu0 %v142
    %v144 = vand.u32 %v28, 4294901760
    %v145 = vsub.f32 %v28, %v144
    %146 = vmatpush.msra.mxu0 %v145
    %v147 = vand.u32 %v27, 4294901760
    %v148 = vsub.f32 %v27, %v147
    %149 = vmatpush.msra.mxu0 %v148
    %v150 = vand.u32 %v26, 4294901760
    %v151 = vsub.f32 %v26, %v150
    %152 = vmatpush.msra.mxu0 %v151
    %v153 = vand.u32 %v25, 4294901760
    %v154 = vsub.f32 %v25, %v153
    %155 = vmatpush.msra.mxu0 %v154
    %v156 = vand.u32 %v24, 4294901760
    %v157 = vsub.f32 %v24, %v156
    %158 = vmatpush.msra.mxu0 %v157
    %v159 = vand.u32 %v23, 4294901760
    %v160 = vsub.f32 %v23, %v159
    %161 = vmatpush.msra.mxu0 %v160
    %v162 = vand.u32 %v34, 4294901760
    %v163 = vsub.f32 %v34, %v162
    %164 = vmatmul.f32.gmra.mxu0 %v163
    %v165 = vpop.f32.mrf.mxu0
    %v166 = vadd.f32 %v128, %v165
    %167 = vdwg.mxu0
    %168 = vmatpush.msra.mxu0 0.0
    %169 = vmatpush.msra.mxu0 0.0
    %170 = vmatpush.msra.mxu0 0.0
    %171 = vmatpush.msra.mxu0 0.0
    %172 = vmatpush.msra.mxu0 0.0
    %173 = vmatpush.msra.mxu0 0.0
    %174 = vmatpush.msra.mxu0 0.0
    %175 = vmatpush.msra.mxu0 0.0
    %v176 = vand.u32 %v30, 4294901760
    %177 = vmatpush.msra.mxu0 %v176
    %v178 = vand.u32 %v29, 4294901760
    %179 = vmatpush.msra.mxu0 %v178
    %v180 = vand.u32 %v28, 4294901760
    %181 = vmatpush.msra.mxu0 %v180
    %v182 = vand.u32 %v27, 4294901760
    %183 = vmatpush.msra.mxu0 %v182
    %v184 = vand.u32 %v26, 4294901760
    %185 = vmatpush.msra.mxu0 %v184
    %v186 = vand.u32 %v25, 4294901760
    %187 = vmatpush.msra.mxu0 %v186
    %v188 = vand.u32 %v24, 4294901760
    %189 = vmatpush.msra.mxu0 %v188
    %v190 = vand.u32 %v23, 4294901760
    %191 = vmatpush.msra.mxu0 %v190
    %v192 = vand.u32 %v34, 4294901760
    %v193 = vsub.f32 %v34, %v192
    %v194 = vand.u32 %v193, 4294901760
    %195 = vmatmul.f32.gmra.mxu0 %v194
    %v196 = vpop.f32.mrf.mxu0
    %v197 = vadd.f32 %v166, %v196
    %198 = vdwg.mxu0
    %199 = vmatpush.msra.mxu0 0.0
    %200 = vmatpush.msra.mxu0 0.0
    %201 = vmatpush.msra.mxu0 0.0
    %202 = vmatpush.msra.mxu0 0.0
    %203 = vmatpush.msra.mxu0 0.0
    %204 = vmatpush.msra.mxu0 0.0
    %205 = vmatpush.msra.mxu0 0.0
    %206 = vmatpush.msra.mxu0 0.0
    %v207 = vand.u32 %v30, 4294901760
    %v208 = vsub.f32 %v30, %v207
    %v209 = vand.u32 %v208, 4294901760
    %210 = vmatpush.msra.mxu0 %v209
    %v211 = vand.u32 %v29, 4294901760
    %v212 = vsub.f32 %v29, %v211
    %v213 = vand.u32 %v212, 4294901760
    %214 = vmatpush.msra.mxu0 %v213
    %v215 = vand.u32 %v28, 4294901760
    %v216 = vsub.f32 %v28, %v215
    %v217 = vand.u32 %v216, 4294901760
    %218 = vmatpush.msra.mxu0 %v217
    %v219 = vand.u32 %v27, 4294901760
    %v220 = vsub.f32 %v27, %v219
    %v221 = vand.u32 %v220, 4294901760
    %222 = vmatpush.msra.mxu0 %v221
    %v223 = vand.u32 %v26, 4294901760
    %v224 = vsub.f32 %v26, %v223
    %v225 = vand.u32 %v224, 4294901760
    %226 = vmatpush.msra.mxu0 %v225
    %v227 = vand.u32 %v25, 4294901760
    %v228 = vsub.f32 %v25, %v227
    %v229 = vand.u32 %v228, 4294901760
    %230 = vmatpush.msra.mxu0 %v229
    %v231 = vand.u32 %v24, 4294901760
    %v232 = vsub.f32 %v24, %v231
    %v233 = vand.u32 %v232, 4294901760
    %234 = vmatpush.msra.mxu0 %v233
    %v235 = vand.u32 %v23, 4294901760
    %v236 = vsub.f32 %v23, %v235
    %v237 = vand.u32 %v236, 4294901760
    %238 = vmatpush.msra.mxu0 %v237
    %v239 = vand.u32 %v34, 4294901760
    %240 = vmatmul.f32.gmra.mxu0 %v239
    %v241 = vpop.f32.mrf.mxu0
    %v242 = vadd.f32 %v197, %v241
    %243 = vdwg.mxu0
    %244 = vmatpush.msra.mxu0 0.0
    %245 = vmatpush.msra.mxu0 0.0
    %246 = vmatpush.msra.mxu0 0.0
    %247 = vmatpush.msra.mxu0 0.0
    %248 = vmatpush.msra.mxu0 0.0
    %249 = vmatpush.msra.mxu0 0.0
    %250 = vmatpush.msra.mxu0 0.0
    %251 = vmatpush.msra.mxu0 0.0
    %v252 = vand.u32 %v30, 4294901760
    %253 = vmatpush.msra.mxu0 %v252
    %v254 = vand.u32 %v29, 4294901760
    %255 = vmatpush.msra.mxu0 %v254
    %v256 = vand.u32 %v28, 4294901760
    %257 = vmatpush.msra.mxu0 %v256
    %v258 = vand.u32 %v27, 4294901760
    %259 = vmatpush.msra.mxu0 %v258
    %v260 = vand.u32 %v26, 4294901760
    %261 = vmatpush.msra.mxu0 %v260
    %v262 = vand.u32 %v25, 4294901760
    %263 = vmatpush.msra.mxu0 %v262
    %v264 = vand.u32 %v24, 4294901760
    %265 = vmatpush.msra.mxu0 %v264
    %v266 = vand.u32 %v23, 4294901760
    %267 = vmatpush.msra.mxu0 %v266
    %v268 = vand.u32 %v34, 4294901760
    %269 = vmatmul.f32.gmra.mxu0 %v268
    %v270 = vpop.f32.mrf.mxu0
    %v271 = vadd.f32 %v242, %v270
    %272 = vdwg.mxu0
    %v273 = vmax.f32 %v271, 0.0
    %v274 = vld [vmem:[%s2] sm:$0xff]
    %v275 = vld [vmem:[%s2 + $0x8] sm:$0xff]
    %v276 = vld [vmem:[%s2 + $0x10] sm:$0xff]
    %v277 = vld [vmem:[%s2 + $0x18] sm:$0xff]
    %v278 = vperm.slane %v20, 0
    %vm279 = vcmask 261120
    %v281 = vsel %vm279, %v273, 0
    %283 = vmatpush.msra.mxu0 0.0
    %284 = vmatpush.msra.mxu0 0.0
    %285 = vmatpush.msra.mxu0 0.0
    %286 = vmatpush.msra.mxu0 0.0
    %287 = vmatpush.msra.mxu0 0.0
    %288 = vmatpush.msra.mxu0 0.0
    %289 = vmatpush.msra.mxu0 0.0
    %290 = vmatpush.msra.mxu0 0.0
    %291 = vmatpush.msra.mxu0 0.0
    %292 = vmatpush.msra.mxu0 0.0
    %293 = vmatpush.msra.mxu0 0.0
    %294 = vmatpush.msra.mxu0 0.0
    %v295 = vand.u32 %v277, 4294901760
    %296 = vmatpush.msra.mxu0 %v295
    %v297 = vand.u32 %v276, 4294901760
    %298 = vmatpush.msra.mxu0 %v297
    %v299 = vand.u32 %v275, 4294901760
    %300 = vmatpush.msra.mxu0 %v299
    %v301 = vand.u32 %v274, 4294901760
    %302 = vmatpush.msra.mxu0 %v301
    %v303 = vand.u32 %v281, 4294901760
    %v304 = vsub.f32 %v281, %v303
    %v305 = vand.u32 %v304, 4294901760
    %v306 = vsub.f32 %v304, %v305
    %v307 = vand.u32 %v306, 4294901760
    %308 = vmatmul.f32.gmra.mxu0 %v307
    %v309 = vpop.f32.mrf.mxu0
    %v310 = vadd.f32 %v278, %v309
    %311 = vdwg.mxu0
    %312 = vmatpush.msra.mxu0 0.0
    %313 = vmatpush.msra.mxu0 0.0
    %314 = vmatpush.msra.mxu0 0.0
    %315 = vmatpush.msra.mxu0 0.0
    %316 = vmatpush.msra.mxu0 0.0
    %317 = vmatpush.msra.mxu0 0.0
    %318 = vmatpush.msra.mxu0 0.0
    %319 = vmatpush.msra.mxu0 0.0
    %320 = vmatpush.msra.mxu0 0.0
    %321 = vmatpush.msra.mxu0 0.0
    %322 = vmatpush.msra.mxu0 0.0
    %323 = vmatpush.msra.mxu0 0.0
    %v324 = vand.u32 %v277, 4294901760
    %v325 = vsub.f32 %v277, %v324
    %v326 = vand.u32 %v325, 4294901760
    %v327 = vsub.f32 %v325, %v326
    %v328 = vand.u32 %v327, 4294901760
    %329 = vmatpush.msra.mxu0 %v328
    %v330 = vand.u32 %v276, 4294901760
    %v331 = vsub.f32 %v276, %v330
    %v332 = vand.u32 %v331, 4294901760
    %v333 = vsub.f32 %v331, %v332
    %v334 = vand.u32 %v333, 4294901760
    %335 = vmatpush.msra.mxu0 %v334
    %v336 = vand.u32 %v275, 4294901760
    %v337 = vsub.f32 %v275, %v336
    %v338 = vand.u32 %v337, 4294901760
    %v339 = vsub.f32 %v337, %v338
    %v340 = vand.u32 %v339, 4294901760
    %341 = vmatpush.msra.mxu0 %v340
    %v342 = vand.u32 %v274, 4294901760
    %v343 = vsub.f32 %v274, %v342
    %v344 = vand.u32 %v343, 4294901760
    %v345 = vsub.f32 %v343, %v344
    %v346 = vand.u32 %v345, 4294901760
    %347 = vmatpush.msra.mxu0 %v346
    %v348 = vand.u32 %v281, 4294901760
    %349 = vmatmul.f32.gmra.mxu0 %v348
    %v350 = vpop.f32.mrf.mxu0
    %v351 = vadd.f32 %v310, %v350
    %352 = vdwg.mxu0
    %353 = vmatpush.msra.mxu0 0.0
    %354 = vmatpush.msra.mxu0 0.0
    %355 = vmatpush.msra.mxu0 0.0
    %356 = vmatpush.msra.mxu0 0.0
    %357 = vmatpush.msra.mxu0 0.0
    %358 = vmatpush.msra.mxu0 0.0
    %359 = vmatpush.msra.mxu0 0.0
    %360 = vmatpush.msra.mxu0 0.0
    %361 = vmatpush.msra.mxu0 0.0
    %362 = vmatpush.msra.mxu0 0.0
    %363 = vmatpush.msra.mxu0 0.0
    %364 = vmatpush.msra.mxu0 0.0
    %v365 = vand.u32 %v277, 4294901760
    %v366 = vsub.f32 %v277, %v365
    %367 = vmatpush.msra.mxu0 %v366
    %v368 = vand.u32 %v276, 4294901760
    %v369 = vsub.f32 %v276, %v368
    %370 = vmatpush.msra.mxu0 %v369
    %v371 = vand.u32 %v275, 4294901760
    %v372 = vsub.f32 %v275, %v371
    %373 = vmatpush.msra.mxu0 %v372
    %v374 = vand.u32 %v274, 4294901760
    %v375 = vsub.f32 %v274, %v374
    %376 = vmatpush.msra.mxu0 %v375
    %v377 = vand.u32 %v281, 4294901760
    %v378 = vsub.f32 %v281, %v377
    %379 = vmatmul.f32.gmra.mxu0 %v378
    %v380 = vpop.f32.mrf.mxu0
    %v381 = vadd.f32 %v351, %v380
    %382 = vdwg.mxu0
    %383 = vmatpush.msra.mxu0 0.0
    %384 = vmatpush.msra.mxu0 0.0
    %385 = vmatpush.msra.mxu0 0.0
    %386 = vmatpush.msra.mxu0 0.0
    %387 = vmatpush.msra.mxu0 0.0
    %388 = vmatpush.msra.mxu0 0.0
    %389 = vmatpush.msra.mxu0 0.0
    %390 = vmatpush.msra.mxu0 0.0
    %391 = vmatpush.msra.mxu0 0.0
    %392 = vmatpush.msra.mxu0 0.0
    %393 = vmatpush.msra.mxu0 0.0
    %394 = vmatpush.msra.mxu0 0.0
    %v395 = vand.u32 %v277, 4294901760
    %396 = vmatpush.msra.mxu0 %v395
    %v397 = vand.u32 %v276, 4294901760
    %398 = vmatpush.msra.mxu0 %v397
    %v399 = vand.u32 %v275, 4294901760
    %400 = vmatpush.msra.mxu0 %v399
    %v401 = vand.u32 %v274, 4294901760
    %402 = vmatpush.msra.mxu0 %v401
    %v403 = vand.u32 %v281, 4294901760
    %v404 = vsub.f32 %v281, %v403
    %v405 = vand.u32 %v404, 4294901760
    %406 = vmatmul.f32.gmra.mxu0 %v405
    %v407 = vpop.f32.mrf.mxu0
    %v408 = vadd.f32 %v381, %v407
    %409 = vdwg.mxu0
    %410 = vmatpush.msra.mxu0 0.0
    %411 = vmatpush.msra.mxu0 0.0
    %412 = vmatpush.msra.mxu0 0.0
    %413 = vmatpush.msra.mxu0 0.0
    %414 = vmatpush.msra.mxu0 0.0
    %415 = vmatpush.msra.mxu0 0.0
    %416 = vmatpush.msra.mxu0 0.0
    %417 = vmatpush.msra.mxu0 0.0
    %418 = vmatpush.msra.mxu0 0.0
    %419 = vmatpush.msra.mxu0 0.0
    %420 = vmatpush.msra.mxu0 0.0
    %421 = vmatpush.msra.mxu0 0.0
    %v422 = vand.u32 %v277, 4294901760
    %v423 = vsub.f32 %v277, %v422
    %v424 = vand.u32 %v423, 4294901760
    %425 = vmatpush.msra.mxu0 %v424
    %v426 = vand.u32 %v276, 4294901760
    %v427 = vsub.f32 %v276, %v426
    %v428 = vand.u32 %v427, 4294901760
    %429 = vmatpush.msra.mxu0 %v428
    %v430 = vand.u32 %v275, 4294901760
    %v431 = vsub.f32 %v275, %v430
    %v432 = vand.u32 %v431, 4294901760
    %433 = vmatpush.msra.mxu0 %v432
    %v434 = vand.u32 %v274, 4294901760
    %v435 = vsub.f32 %v274, %v434
    %v436 = vand.u32 %v435, 4294901760
    %437 = vmatpush.msra.mxu0 %v436
    %v438 = vand.u32 %v281, 4294901760
    %439 = vmatmul.f32.gmra.mxu0 %v438
    %v440 = vpop.f32.mrf.mxu0
    %v441 = vadd.f32 %v408, %v440
    %442 = vdwg.mxu0
    %443 = vmatpush.msra.mxu0 0.0
    %444 = vmatpush.msra.mxu0 0.0
    %445 = vmatpush.msra.mxu0 0.0
    %446 = vmatpush.msra.mxu0 0.0
    %447 = vmatpush.msra.mxu0 0.0
    %448 = vmatpush.msra.mxu0 0.0
    %449 = vmatpush.msra.mxu0 0.0
    %450 = vmatpush.msra.mxu0 0.0
    %451 = vmatpush.msra.mxu0 0.0
    %452 = vmatpush.msra.mxu0 0.0
    %453 = vmatpush.msra.mxu0 0.0
    %454 = vmatpush.msra.mxu0 0.0
    %v455 = vand.u32 %v277, 4294901760
    %456 = vmatpush.msra.mxu0 %v455
    %v457 = vand.u32 %v276, 4294901760
    %458 = vmatpush.msra.mxu0 %v457
    %v459 = vand.u32 %v275, 4294901760
    %460 = vmatpush.msra.mxu0 %v459
    %v461 = vand.u32 %v274, 4294901760
    %462 = vmatpush.msra.mxu0 %v461
    %v463 = vand.u32 %v281, 4294901760
    %464 = vmatmul.f32.gmra.mxu0 %v463
    %v465 = vpop.f32.mrf.mxu0
    %v466 = vadd.f32 %v441, %v465
    %467 = vdwg.mxu0
    %v468 = vmax.f32 %v466, 0.0
    %v469 = vperm.slane %v21, 0
    %v470 = vmul.f32 %v468, %v469
    %v471 = vsel %vm279, %v470, 0.0
    %472 = vadd.xlane.f32.xlu0 %v471
    %v473 = vpop.xlane.xlu0 %472
    %475 = vset.pattern.permute.xlu0 0
    %476 = vperm.xlu0 %475, %v22
    %v477 = vpop.permute.xlu0 %476
    %v478 = vperm.slane %v477, 0
    %v480 = vadd.f32 %v473, %v478
    %v481 = vsub.f32 0.0, %v480
    %v482 = vmul.f32 %v481, 1.442695
    %v483 = vpow.pop %v482
    %v484 = vadd.f32 %v483, 1.0
    %v485 = vrcp.pop %v484
    %v486 = vmul.f32 %v484, %v485
    %v487 = vsub.f32 1.0, %v486
    %v488 = vmul.f32 %v485, %v487
    %v489 = vadd.f32 %v485, %v488
    %vm490 = vweird.f32 %v484
    %vm491 = vweird.f32 %v485
    %vm492 = vmor %vm490, %vm491
    %v493 = vsel %vm492, %v485, %v489
    %v494 = vand.u32 2147483647, %v484
    %vm495 = vcmp.eq.f32.partialorder %v494, 8.507059e+37
    %v496 = vand.u32 %v484, 2147483648
    %v497 = vor.u32 1.1754944e-38, %v496
    %v498 = vsel %vm495, %v497, %v493
    %500 = vset.pattern.permute.xlu0 0
    %501 = vperm.xlu0 %500, %v498
    %v502 = vpop.permute.xlu0 %501
    %v503 = vlaneseq
    %v504 = vand.u32 %v503, 127
    %v505 = vperm.slane %v502, %v504
    %vm507 = vcmask 57344
    %508 = vst.msk [vmem:[#allocation2] sm:$0x1] %vm507, %v505
    // Predicated region
    $region18: #{tpu_custom_call.1} parent=1 // pred_check
      _
    $region19: #{tpu_custom_call.1} parent=1 // pred_check_branch
      %510 = sbr.rel (0) target = $region21
    $region20: #{tpu_custom_call.1} parent=1 // pred_region
      %512 = vsyncadd [#allocation3], 0
      %s514 = sshll.u32 [#allocation2], 4
      %s515 = int_to_ptr.vmem [resolvable:$true] %s514
      %s516 = sshll.u32 %s4, 4
      %s517 = int_to_ptr.hbm [resolvable:$true] %s516
      %519 = dma.vmem_to_hbm [thread:$0]  %s515, 16, %s517, [#allocation3]
    $region21: #{tpu_custom_call.1} parent=1 // pred_fallthru
      _
    // Predicated region
    $region22: #{tpu_custom_call.1} parent=1 // pred_check
      _
    $region23: #{tpu_custom_call.1} parent=1 // pred_check_branch
      %521 = sbr.rel (0) target = $region25
    $region24: #{tpu_custom_call.1} parent=1 // pred_region
      %523 = dma.done [#allocation3], 16
    $region25: #{tpu_custom_call.1} parent=1 // pred_fallthru
      _
    %524 = vsyncpa [#allocation3], 1

// kernel: tpu_custom_call.1
$region0: #{tpu_custom_call.1}
  #allocation0 [shape = 'u32[]', space=smem, size = 0x4, offset = 0x4, fixed_abs, tag = 'smem constant byte address 0x4 - core index']
  #allocation1 [shape = 'u32[72,128]{1,0:T(1,128)}', space=vmem, size = 0x9000, scoped, tag = 'internal scratch']
  %s0 = inlined_call_operand.vmem [shape: f32[8,64], index: 0, kind: input, shape index: {}]
  %s1 = inlined_call_operand.vmem [shape: f32[64,32], index: 1, kind: input, shape index: {}]
  %s2 = inlined_call_operand.vmem [shape: f32[32,32], index: 2, kind: input, shape index: {}]
  %s3 = inlined_call_operand.vmem [shape: f32[4,32], index: 3, kind: input, shape index: {}]
  %s4 = inlined_call_operand.hbm [shape: f32[1,1,8], index: 4, kind: output, shape index: {}]
  %s5 = sld [smem:[#allocation0]]
  $region26: #{tpu_custom_call.1} parent=0
    _
  %s7 = ssub.s32 1, %s5
  %s8 = scalar_select 0, %s7, %s5
  $region1: #{tpu_custom_call.1} parent=0
    #allocation2 [shape = 'u8[512]{0}', space=vmem, size = 0x400, scoped, tag = 'output window, operand 0, single buffered']
    #allocation3 [shape = 's32[1]{0}', space=sflag, size = 0x4, scoped, tag = 'scoped memory for tpu_custom_call.1']
    %9 = vsyncpa [#allocation3], 0
    // Predicated region
    $region2: #{tpu_custom_call.1} parent=1 // pred_check
      _
    $region3: #{tpu_custom_call.1} parent=1 // pred_check_branch
      %11 = sbr.rel (0) target = $region5
    $region4: #{tpu_custom_call.1} parent=1 // pred_region
      _
    $region5: #{tpu_custom_call.1} parent=1 // pred_fallthru
      _
    // Predicated region
    $region6: #{tpu_custom_call.1} parent=1 // pred_check
      _
    $region7: #{tpu_custom_call.1} parent=1 // pred_check_branch
      %13 = sbr.rel (0) target = $region9
    $region8: #{tpu_custom_call.1} parent=1 // pred_region
      _
    $region9: #{tpu_custom_call.1} parent=1 // pred_fallthru
      _
    // Predicated region
    $region10: #{tpu_custom_call.1} parent=1 // pred_check
      _
    $region11: #{tpu_custom_call.1} parent=1 // pred_check_branch
      %15 = sbr.rel (0) target = $region13
    $region12: #{tpu_custom_call.1} parent=1 // pred_region
      _
    $region13: #{tpu_custom_call.1} parent=1 // pred_fallthru
      _
    // Predicated region
    $region14: #{tpu_custom_call.1} parent=1 // pred_check
      _
    $region15: #{tpu_custom_call.1} parent=1 // pred_check_branch
      %17 = sbr.rel (0) target = $region17
    $region16: #{tpu_custom_call.1} parent=1 // pred_region
      _
    $region17: #{tpu_custom_call.1} parent=1 // pred_fallthru
      _
    %v18 = vld [vmem:[%s0] sm:$0xff]
    %v19 = vld [vmem:[%s3] sm:$0x1]
    %v20 = vld [vmem:[%s3 + $0x1] sm:$0x1]
    %v21 = vld [vmem:[%s3 + $0x2] sm:$0x1]
    %v22 = vld [vmem:[%s3 + $0x3] sm:$0x1]
    %v23 = vld [vmem:[%s1] sm:$0xff]
    %v24 = vld [vmem:[%s1 + $0x8] sm:$0xff]
    %v25 = vld [vmem:[%s1 + $0x10] sm:$0xff]
    %v26 = vld [vmem:[%s1 + $0x18] sm:$0xff]
    %v27 = vld [vmem:[%s1 + $0x20] sm:$0xff]
    %v28 = vld [vmem:[%s1 + $0x28] sm:$0xff]
    %v29 = vld [vmem:[%s1 + $0x30] sm:$0xff]
    %v30 = vld [vmem:[%s1 + $0x38] sm:$0xff]
    %v31 = vperm.slane %v19, 0
    %vm32 = vcmask 523264
    %v34 = vsel %vm32, %v18, 0
    %36 = vmatpush.msra.mxu0 0.0
    %37 = vmatpush.msra.mxu0 0.0
    %38 = vmatpush.msra.mxu0 0.0
    %39 = vmatpush.msra.mxu0 0.0
    %40 = vmatpush.msra.mxu0 0.0
    %41 = vmatpush.msra.mxu0 0.0
    %42 = vmatpush.msra.mxu0 0.0
    %43 = vmatpush.msra.mxu0 0.0
    %v44 = vand.u32 %v30, 4294901760
    %45 = vmatpush.msra.mxu0 %v44
    %v46 = vand.u32 %v29, 4294901760
    %47 = vmatpush.msra.mxu0 %v46
    %v48 = vand.u32 %v28, 4294901760
    %49 = vmatpush.msra.mxu0 %v48
    %v50 = vand.u32 %v27, 4294901760
    %51 = vmatpush.msra.mxu0 %v50
    %v52 = vand.u32 %v26, 4294901760
    %53 = vmatpush.msra.mxu0 %v52
    %v54 = vand.u32 %v25, 4294901760
    %55 = vmatpush.msra.mxu0 %v54
    %v56 = vand.u32 %v24, 4294901760
    %57 = vmatpush.msra.mxu0 %v56
    %v58 = vand.u32 %v23, 4294901760
    %59 = vmatpush.msra.mxu0 %v58
    %v60 = vand.u32 %v34, 4294901760
    %v61 = vsub.f32 %v34, %v60
    %v62 = vand.u32 %v61, 4294901760
    %v63 = vsub.f32 %v61, %v62
    %v64 = vand.u32 %v63, 4294901760
    %65 = vmatmul.f32.gmra.mxu0 %v64
    %v66 = vpop.f32.mrf.mxu0
    %v67 = vadd.f32 %v31, %v66
    %68 = vdwg.mxu0
    %69 = vmatpush.msra.mxu0 0.0
    %70 = vmatpush.msra.mxu0 0.0
    %71 = vmatpush.msra.mxu0 0.0
    %72 = vmatpush.msra.mxu0 0.0
    %73 = vmatpush.msra.mxu0 0.0
    %74 = vmatpush.msra.mxu0 0.0
    %75 = vmatpush.msra.mxu0 0.0
    %76 = vmatpush.msra.mxu0 0.0
    %v77 = vand.u32 %v30, 4294901760
    %v78 = vsub.f32 %v30, %v77
    %v79 = vand.u32 %v78, 4294901760
    %v80 = vsub.f32 %v78, %v79
    %v81 = vand.u32 %v80, 4294901760
    %82 = vmatpush.msra.mxu0 %v81
    %v83 = vand.u32 %v29, 4294901760
    %v84 = vsub.f32 %v29, %v83
    %v85 = vand.u32 %v84, 4294901760
    %v86 = vsub.f32 %v84, %v85
    %v87 = vand.u32 %v86, 4294901760
    %88 = vmatpush.msra.mxu0 %v87
    %v89 = vand.u32 %v28, 4294901760
    %v90 = vsub.f32 %v28, %v89
    %v91 = vand.u32 %v90, 4294901760
    %v92 = vsub.f32 %v90, %v91
    %v93 = vand.u32 %v92, 4294901760
    %94 = vmatpush.msra.mxu0 %v93
    %v95 = vand.u32 %v27, 4294901760
    %v96 = vsub.f32 %v27, %v95
    %v97 = vand.u32 %v96, 4294901760
    %v98 = vsub.f32 %v96, %v97
    %v99 = vand.u32 %v98, 4294901760
    %100 = vmatpush.msra.mxu0 %v99
    %v101 = vand.u32 %v26, 4294901760
    %v102 = vsub.f32 %v26, %v101
    %v103 = vand.u32 %v102, 4294901760
    %v104 = vsub.f32 %v102, %v103
    %v105 = vand.u32 %v104, 4294901760
    %106 = vmatpush.msra.mxu0 %v105
    %v107 = vand.u32 %v25, 4294901760
    %v108 = vsub.f32 %v25, %v107
    %v109 = vand.u32 %v108, 4294901760
    %v110 = vsub.f32 %v108, %v109
    %v111 = vand.u32 %v110, 4294901760
    %112 = vmatpush.msra.mxu0 %v111
    %v113 = vand.u32 %v24, 4294901760
    %v114 = vsub.f32 %v24, %v113
    %v115 = vand.u32 %v114, 4294901760
    %v116 = vsub.f32 %v114, %v115
    %v117 = vand.u32 %v116, 4294901760
    %118 = vmatpush.msra.mxu0 %v117
    %v119 = vand.u32 %v23, 4294901760
    %v120 = vsub.f32 %v23, %v119
    %v121 = vand.u32 %v120, 4294901760
    %v122 = vsub.f32 %v120, %v121
    %v123 = vand.u32 %v122, 4294901760
    %124 = vmatpush.msra.mxu0 %v123
    %v125 = vand.u32 %v34, 4294901760
    %126 = vmatmul.f32.gmra.mxu0 %v125
    %v127 = vpop.f32.mrf.mxu0
    %v128 = vadd.f32 %v67, %v127
    %129 = vdwg.mxu0
    %130 = vmatpush.msra.mxu0 0.0
    %131 = vmatpush.msra.mxu0 0.0
    %132 = vmatpush.msra.mxu0 0.0
    %133 = vmatpush.msra.mxu0 0.0
    %134 = vmatpush.msra.mxu0 0.0
    %135 = vmatpush.msra.mxu0 0.0
    %136 = vmatpush.msra.mxu0 0.0
    %137 = vmatpush.msra.mxu0 0.0
    %v138 = vand.u32 %v30, 4294901760
    %v139 = vsub.f32 %v30, %v138
    %140 = vmatpush.msra.mxu0 %v139
    %v141 = vand.u32 %v29, 4294901760
    %v142 = vsub.f32 %v29, %v141
    %143 = vmatpush.msra.mxu0 %v142
    %v144 = vand.u32 %v28, 4294901760
    %v145 = vsub.f32 %v28, %v144
    %146 = vmatpush.msra.mxu0 %v145
    %v147 = vand.u32 %v27, 4294901760
    %v148 = vsub.f32 %v27, %v147
    %149 = vmatpush.msra.mxu0 %v148
    %v150 = vand.u32 %v26, 4294901760
    %v151 = vsub.f32 %v26, %v150
    %152 = vmatpush.msra.mxu0 %v151
    %v153 = vand.u32 %v25, 4294901760
    %v154 = vsub.f32 %v25, %v153
    %155 = vmatpush.msra.mxu0 %v154
    %v156 = vand.u32 %v24, 4294901760
    %v157 = vsub.f32 %v24, %v156
    %158 = vmatpush.msra.mxu0 %v157
    %v159 = vand.u32 %v23, 4294901760
    %v160 = vsub.f32 %v23, %v159
    %161 = vmatpush.msra.mxu0 %v160
    %v162 = vand.u32 %v34, 4294901760
    %v163 = vsub.f32 %v34, %v162
    %164 = vmatmul.f32.gmra.mxu0 %v163
    %v165 = vpop.f32.mrf.mxu0
    %v166 = vadd.f32 %v128, %v165
    %167 = vdwg.mxu0
    %168 = vmatpush.msra.mxu0 0.0
    %169 = vmatpush.msra.mxu0 0.0
    %170 = vmatpush.msra.mxu0 0.0
    %171 = vmatpush.msra.mxu0 0.0
    %172 = vmatpush.msra.mxu0 0.0
    %173 = vmatpush.msra.mxu0 0.0
    %174 = vmatpush.msra.mxu0 0.0
    %175 = vmatpush.msra.mxu0 0.0
    %v176 = vand.u32 %v30, 4294901760
    %177 = vmatpush.msra.mxu0 %v176
    %v178 = vand.u32 %v29, 4294901760
    %179 = vmatpush.msra.mxu0 %v178
    %v180 = vand.u32 %v28, 4294901760
    %181 = vmatpush.msra.mxu0 %v180
    %v182 = vand.u32 %v27, 4294901760
    %183 = vmatpush.msra.mxu0 %v182
    %v184 = vand.u32 %v26, 4294901760
    %185 = vmatpush.msra.mxu0 %v184
    %v186 = vand.u32 %v25, 4294901760
    %187 = vmatpush.msra.mxu0 %v186
    %v188 = vand.u32 %v24, 4294901760
    %189 = vmatpush.msra.mxu0 %v188
    %v190 = vand.u32 %v23, 4294901760
    %191 = vmatpush.msra.mxu0 %v190
    %v192 = vand.u32 %v34, 4294901760
    %v193 = vsub.f32 %v34, %v192
    %v194 = vand.u32 %v193, 4294901760
    %195 = vmatmul.f32.gmra.mxu0 %v194
    %v196 = vpop.f32.mrf.mxu0
    %v197 = vadd.f32 %v166, %v196
    %198 = vdwg.mxu0
    %199 = vmatpush.msra.mxu0 0.0
    %200 = vmatpush.msra.mxu0 0.0
    %201 = vmatpush.msra.mxu0 0.0
    %202 = vmatpush.msra.mxu0 0.0
    %203 = vmatpush.msra.mxu0 0.0
    %204 = vmatpush.msra.mxu0 0.0
    %205 = vmatpush.msra.mxu0 0.0
    %206 = vmatpush.msra.mxu0 0.0
    %v207 = vand.u32 %v30, 4294901760
    %v208 = vsub.f32 %v30, %v207
    %v209 = vand.u32 %v208, 4294901760
    %210 = vmatpush.msra.mxu0 %v209
    %v211 = vand.u32 %v29, 4294901760
    %v212 = vsub.f32 %v29, %v211
    %v213 = vand.u32 %v212, 4294901760
    %214 = vmatpush.msra.mxu0 %v213
    %v215 = vand.u32 %v28, 4294901760
    %v216 = vsub.f32 %v28, %v215
    %v217 = vand.u32 %v216, 4294901760
    %218 = vmatpush.msra.mxu0 %v217
    %v219 = vand.u32 %v27, 4294901760
    %v220 = vsub.f32 %v27, %v219
    %v221 = vand.u32 %v220, 4294901760
    %222 = vmatpush.msra.mxu0 %v221
    %v223 = vand.u32 %v26, 4294901760
    %v224 = vsub.f32 %v26, %v223
    %v225 = vand.u32 %v224, 4294901760
    %226 = vmatpush.msra.mxu0 %v225
    %v227 = vand.u32 %v25, 4294901760
    %v228 = vsub.f32 %v25, %v227
    %v229 = vand.u32 %v228, 4294901760
    %230 = vmatpush.msra.mxu0 %v229
    %v231 = vand.u32 %v24, 4294901760
    %v232 = vsub.f32 %v24, %v231
    %v233 = vand.u32 %v232, 4294901760
    %234 = vmatpush.msra.mxu0 %v233
    %v235 = vand.u32 %v23, 4294901760
    %v236 = vsub.f32 %v23, %v235
    %v237 = vand.u32 %v236, 4294901760
    %238 = vmatpush.msra.mxu0 %v237
    %v239 = vand.u32 %v34, 4294901760
    %240 = vmatmul.f32.gmra.mxu0 %v239
    %v241 = vpop.f32.mrf.mxu0
    %v242 = vadd.f32 %v197, %v241
    %243 = vdwg.mxu0
    %244 = vmatpush.msra.mxu0 0.0
    %245 = vmatpush.msra.mxu0 0.0
    %246 = vmatpush.msra.mxu0 0.0
    %247 = vmatpush.msra.mxu0 0.0
    %248 = vmatpush.msra.mxu0 0.0
    %249 = vmatpush.msra.mxu0 0.0
    %250 = vmatpush.msra.mxu0 0.0
    %251 = vmatpush.msra.mxu0 0.0
    %v252 = vand.u32 %v30, 4294901760
    %253 = vmatpush.msra.mxu0 %v252
    %v254 = vand.u32 %v29, 4294901760
    %255 = vmatpush.msra.mxu0 %v254
    %v256 = vand.u32 %v28, 4294901760
    %257 = vmatpush.msra.mxu0 %v256
    %v258 = vand.u32 %v27, 4294901760
    %259 = vmatpush.msra.mxu0 %v258
    %v260 = vand.u32 %v26, 4294901760
    %261 = vmatpush.msra.mxu0 %v260
    %v262 = vand.u32 %v25, 4294901760
    %263 = vmatpush.msra.mxu0 %v262
    %v264 = vand.u32 %v24, 4294901760
    %265 = vmatpush.msra.mxu0 %v264
    %v266 = vand.u32 %v23, 4294901760
    %267 = vmatpush.msra.mxu0 %v266
    %v268 = vand.u32 %v34, 4294901760
    %269 = vmatmul.f32.gmra.mxu0 %v268
    %v270 = vpop.f32.mrf.mxu0
    %v271 = vadd.f32 %v242, %v270
    %272 = vdwg.mxu0
    %v273 = vmax.f32 %v271, 0.0
    %v274 = vld [vmem:[%s2] sm:$0xff]
    %v275 = vld [vmem:[%s2 + $0x8] sm:$0xff]
    %v276 = vld [vmem:[%s2 + $0x10] sm:$0xff]
    %v277 = vld [vmem:[%s2 + $0x18] sm:$0xff]
    %v278 = vperm.slane %v20, 0
    %vm279 = vcmask 261120
    %v281 = vsel %vm279, %v273, 0
    %283 = vmatpush.msra.mxu0 0.0
    %284 = vmatpush.msra.mxu0 0.0
    %285 = vmatpush.msra.mxu0 0.0
    %286 = vmatpush.msra.mxu0 0.0
    %287 = vmatpush.msra.mxu0 0.0
    %288 = vmatpush.msra.mxu0 0.0
    %289 = vmatpush.msra.mxu0 0.0
    %290 = vmatpush.msra.mxu0 0.0
    %291 = vmatpush.msra.mxu0 0.0
    %292 = vmatpush.msra.mxu0 0.0
    %293 = vmatpush.msra.mxu0 0.0
    %294 = vmatpush.msra.mxu0 0.0
    %v295 = vand.u32 %v277, 4294901760
    %296 = vmatpush.msra.mxu0 %v295
    %v297 = vand.u32 %v276, 4294901760
    %298 = vmatpush.msra.mxu0 %v297
    %v299 = vand.u32 %v275, 4294901760
    %300 = vmatpush.msra.mxu0 %v299
    %v301 = vand.u32 %v274, 4294901760
    %302 = vmatpush.msra.mxu0 %v301
    %v303 = vand.u32 %v281, 4294901760
    %v304 = vsub.f32 %v281, %v303
    %v305 = vand.u32 %v304, 4294901760
    %v306 = vsub.f32 %v304, %v305
    %v307 = vand.u32 %v306, 4294901760
    %308 = vmatmul.f32.gmra.mxu0 %v307
    %v309 = vpop.f32.mrf.mxu0
    %v310 = vadd.f32 %v278, %v309
    %311 = vdwg.mxu0
    %312 = vmatpush.msra.mxu0 0.0
    %313 = vmatpush.msra.mxu0 0.0
    %314 = vmatpush.msra.mxu0 0.0
    %315 = vmatpush.msra.mxu0 0.0
    %316 = vmatpush.msra.mxu0 0.0
    %317 = vmatpush.msra.mxu0 0.0
    %318 = vmatpush.msra.mxu0 0.0
    %319 = vmatpush.msra.mxu0 0.0
    %320 = vmatpush.msra.mxu0 0.0
    %321 = vmatpush.msra.mxu0 0.0
    %322 = vmatpush.msra.mxu0 0.0
    %323 = vmatpush.msra.mxu0 0.0
    %v324 = vand.u32 %v277, 4294901760
    %v325 = vsub.f32 %v277, %v324
    %v326 = vand.u32 %v325, 4294901760
    %v327 = vsub.f32 %v325, %v326
    %v328 = vand.u32 %v327, 4294901760
    %329 = vmatpush.msra.mxu0 %v328
    %v330 = vand.u32 %v276, 4294901760
    %v331 = vsub.f32 %v276, %v330
    %v332 = vand.u32 %v331, 4294901760
    %v333 = vsub.f32 %v331, %v332
    %v334 = vand.u32 %v333, 4294901760
    %335 = vmatpush.msra.mxu0 %v334
    %v336 = vand.u32 %v275, 4294901760
    %v337 = vsub.f32 %v275, %v336
    %v338 = vand.u32 %v337, 4294901760
    %v339 = vsub.f32 %v337, %v338
    %v340 = vand.u32 %v339, 4294901760
    %341 = vmatpush.msra.mxu0 %v340
    %v342 = vand.u32 %v274, 4294901760
    %v343 = vsub.f32 %v274, %v342
    %v344 = vand.u32 %v343, 4294901760
    %v345 = vsub.f32 %v343, %v344
    %v346 = vand.u32 %v345, 4294901760
    %347 = vmatpush.msra.mxu0 %v346
    %v348 = vand.u32 %v281, 4294901760
    %349 = vmatmul.f32.gmra.mxu0 %v348
    %v350 = vpop.f32.mrf.mxu0
    %v351 = vadd.f32 %v310, %v350
    %352 = vdwg.mxu0
    %353 = vmatpush.msra.mxu0 0.0
    %354 = vmatpush.msra.mxu0 0.0
    %355 = vmatpush.msra.mxu0 0.0
    %356 = vmatpush.msra.mxu0 0.0
    %357 = vmatpush.msra.mxu0 0.0
    %358 = vmatpush.msra.mxu0 0.0
    %359 = vmatpush.msra.mxu0 0.0
    %360 = vmatpush.msra.mxu0 0.0
    %361 = vmatpush.msra.mxu0 0.0
    %362 = vmatpush.msra.mxu0 0.0
    %363 = vmatpush.msra.mxu0 0.0
    %364 = vmatpush.msra.mxu0 0.0
    %v365 = vand.u32 %v277, 4294901760
    %v366 = vsub.f32 %v277, %v365
    %367 = vmatpush.msra.mxu0 %v366
    %v368 = vand.u32 %v276, 4294901760
    %v369 = vsub.f32 %v276, %v368
    %370 = vmatpush.msra.mxu0 %v369
    %v371 = vand.u32 %v275, 4294901760
    %v372 = vsub.f32 %v275, %v371
    %373 = vmatpush.msra.mxu0 %v372
    %v374 = vand.u32 %v274, 4294901760
    %v375 = vsub.f32 %v274, %v374
    %376 = vmatpush.msra.mxu0 %v375
    %v377 = vand.u32 %v281, 4294901760
    %v378 = vsub.f32 %v281, %v377
    %379 = vmatmul.f32.gmra.mxu0 %v378
    %v380 = vpop.f32.mrf.mxu0
    %v381 = vadd.f32 %v351, %v380
    %382 = vdwg.mxu0
    %383 = vmatpush.msra.mxu0 0.0
    %384 = vmatpush.msra.mxu0 0.0
    %385 = vmatpush.msra.mxu0 0.0
    %386 = vmatpush.msra.mxu0 0.0
    %387 = vmatpush.msra.mxu0 0.0
    %388 = vmatpush.msra.mxu0 0.0
    %389 = vmatpush.msra.mxu0 0.0
    %390 = vmatpush.msra.mxu0 0.0
    %391 = vmatpush.msra.mxu0 0.0
    %392 = vmatpush.msra.mxu0 0.0
    %393 = vmatpush.msra.mxu0 0.0
    %394 = vmatpush.msra.mxu0 0.0
    %v395 = vand.u32 %v277, 4294901760
    %396 = vmatpush.msra.mxu0 %v395
    %v397 = vand.u32 %v276, 4294901760
    %398 = vmatpush.msra.mxu0 %v397
    %v399 = vand.u32 %v275, 4294901760
    %400 = vmatpush.msra.mxu0 %v399
    %v401 = vand.u32 %v274, 4294901760
    %402 = vmatpush.msra.mxu0 %v401
    %v403 = vand.u32 %v281, 4294901760
    %v404 = vsub.f32 %v281, %v403
    %v405 = vand.u32 %v404, 4294901760
    %406 = vmatmul.f32.gmra.mxu0 %v405
    %v407 = vpop.f32.mrf.mxu0
    %v408 = vadd.f32 %v381, %v407
    %409 = vdwg.mxu0
    %410 = vmatpush.msra.mxu0 0.0
    %411 = vmatpush.msra.mxu0 0.0
    %412 = vmatpush.msra.mxu0 0.0
    %413 = vmatpush.msra.mxu0 0.0
    %414 = vmatpush.msra.mxu0 0.0
    %415 = vmatpush.msra.mxu0 0.0
    %416 = vmatpush.msra.mxu0 0.0
    %417 = vmatpush.msra.mxu0 0.0
    %418 = vmatpush.msra.mxu0 0.0
    %419 = vmatpush.msra.mxu0 0.0
    %420 = vmatpush.msra.mxu0 0.0
    %421 = vmatpush.msra.mxu0 0.0
    %v422 = vand.u32 %v277, 4294901760
    %v423 = vsub.f32 %v277, %v422
    %v424 = vand.u32 %v423, 4294901760
    %425 = vmatpush.msra.mxu0 %v424
    %v426 = vand.u32 %v276, 4294901760
    %v427 = vsub.f32 %v276, %v426
    %v428 = vand.u32 %v427, 4294901760
    %429 = vmatpush.msra.mxu0 %v428
    %v430 = vand.u32 %v275, 4294901760
    %v431 = vsub.f32 %v275, %v430
    %v432 = vand.u32 %v431, 4294901760
    %433 = vmatpush.msra.mxu0 %v432
    %v434 = vand.u32 %v274, 4294901760
    %v435 = vsub.f32 %v274, %v434
    %v436 = vand.u32 %v435, 4294901760
    %437 = vmatpush.msra.mxu0 %v436
    %v438 = vand.u32 %v281, 4294901760
    %439 = vmatmul.f32.gmra.mxu0 %v438
    %v440 = vpop.f32.mrf.mxu0
    %v441 = vadd.f32 %v408, %v440
    %442 = vdwg.mxu0
    %443 = vmatpush.msra.mxu0 0.0
    %444 = vmatpush.msra.mxu0 0.0
    %445 = vmatpush.msra.mxu0 0.0
    %446 = vmatpush.msra.mxu0 0.0
    %447 = vmatpush.msra.mxu0 0.0
    %448 = vmatpush.msra.mxu0 0.0
    %449 = vmatpush.msra.mxu0 0.0
    %450 = vmatpush.msra.mxu0 0.0
    %451 = vmatpush.msra.mxu0 0.0
    %452 = vmatpush.msra.mxu0 0.0
    %453 = vmatpush.msra.mxu0 0.0
    %454 = vmatpush.msra.mxu0 0.0
    %v455 = vand.u32 %v277, 4294901760
    %456 = vmatpush.msra.mxu0 %v455
    %v457 = vand.u32 %v276, 4294901760
    %458 = vmatpush.msra.mxu0 %v457
    %v459 = vand.u32 %v275, 4294901760
    %460 = vmatpush.msra.mxu0 %v459
    %v461 = vand.u32 %v274, 4294901760
    %462 = vmatpush.msra.mxu0 %v461
    %v463 = vand.u32 %v281, 4294901760
    %464 = vmatmul.f32.gmra.mxu0 %v463
    %v465 = vpop.f32.mrf.mxu0
    %v466 = vadd.f32 %v441, %v465
    %467 = vdwg.mxu0
    %v468 = vmax.f32 %v466, 0.0
    %v469 = vperm.slane %v21, 0
    %v470 = vmul.f32 %v468, %v469
    %v471 = vsel %vm279, %v470, 0.0
    %472 = vadd.xlane.f32.xlu0 %v471
    %v473 = vpop.xlane.xlu0 %472
    %475 = vset.pattern.permute.xlu0 0
    %476 = vperm.xlu0 %475, %v22
    %v477 = vpop.permute.xlu0 %476
    %v478 = vperm.slane %v477, 0
    %v480 = vadd.f32 %v473, %v478
    %v481 = vsub.f32 0.0, %v480
    %v482 = vmul.f32 %v481, 1.442695
    %v483 = vpow.pop %v482
    %v484 = vadd.f32 %v483, 1.0
    %v485 = vrcp.pop %v484
    %v486 = vmul.f32 %v484, %v485
    %v487 = vsub.f32 1.0, %v486
    %v488 = vmul.f32 %v485, %v487
    %v489 = vadd.f32 %v485, %v488
    %vm490 = vweird.f32 %v484
    %vm491 = vweird.f32 %v485
    %vm492 = vmor %vm490, %vm491
    %v493 = vsel %vm492, %v485, %v489
    %v494 = vand.u32 2147483647, %v484
    %vm495 = vcmp.eq.f32.partialorder %v494, 8.507059e+37
    %v496 = vand.u32 %v484, 2147483648
    %v497 = vor.u32 1.1754944e-38, %v496
    %v498 = vsel %vm495, %v497, %v493
    %500 = vset.pattern.permute.xlu0 0
    %501 = vperm.xlu0 %500, %v498
    %v502 = vpop.permute.xlu0 %501
    %v503 = vlaneseq
    %v504 = vand.u32 %v503, 127
    %v505 = vperm.slane %v502, %v504
    %vm507 = vcmask 57344
    %508 = vst.msk [vmem:[#allocation2] sm:$0x1] %vm507, %v505
    // Predicated region
    $region18: #{tpu_custom_call.1} parent=1 // pred_check
      _
    $region19: #{tpu_custom_call.1} parent=1 // pred_check_branch
      %510 = sbr.rel (0) target = $region21
    $region20: #{tpu_custom_call.1} parent=1 // pred_region
      %512 = vsyncadd [#allocation3], 0
      %s514 = sshll.u32 [#allocation2], 4
      %s515 = int_to_ptr.vmem [resolvable:$true] %s514
      %s516 = sshll.u32 %s4, 4
      %s517 = int_to_ptr.hbm [resolvable:$true] %s516
      %519 = dma.vmem_to_hbm [thread:$0]  %s515, 16, %s517, [#allocation3]
    $region21: #{tpu_custom_call.1} parent=1 // pred_fallthru
      _
    // Predicated region
    $region22: #{tpu_custom_call.1} parent=1 // pred_check
      _
    $region23: #{tpu_custom_call.1} parent=1 // pred_check_branch
      %521 = sbr.rel (0) target = $region25
    $region24: #{tpu_custom_call.1} parent=1 // pred_region
      %523 = dma.done [#allocation3], 16
    $region25: #{tpu_custom_call.1} parent=1 // pred_fallthru
      _
    %524 = vsyncpa [#allocation3], 1

</llo_original>
